<compile_context>
chip_gen: v7x
topology: tpu7x:2x2x1
jax: 0.10.0
libtpu: 0.0.40
codegen_flags: <defaults>
</compile_context>

<pallas_src>
import jax
import jax.numpy as jnp
from jax.experimental import pallas as pl
from jax.experimental.pallas import tpu as pltpu

NPAD = 128   # per-camera padded box slots (lane axis)
PADC = 128   # padded channel width for all MLP layers (lane-dense stores)


def _round_up(x, m):
    return ((x + m - 1) // m) * m


# ----------------------------------------------------------------------------
# Bias folding: layer inputs carry a constant 1.0 in lane `k_in`; the bias is
# placed in weight row `k_in` so the MXU applies it for free.  Non-final layers
# (and optionally the final one) route the 1.0 through to lane `n_out`.
# ----------------------------------------------------------------------------
def _fold_weights(weights, biases, ones_lane_in_output):
    num_layers = len(weights)
    wps = []
    for l, (w, b) in enumerate(zip(weights, biases)):
        k_in, n_out = w.shape
        assert k_in + 1 <= PADC and n_out + 1 <= PADC
        wp = jnp.zeros((PADC, PADC), jnp.float32)
        wp = wp.at[:k_in, :n_out].set(w.astype(jnp.float32))
        wp = wp.at[k_in, :n_out].set(b.astype(jnp.float32))
        if l < num_layers - 1 or ones_lane_in_output:
            wp = wp.at[k_in, n_out].set(1.0)
        wps.append(wp.astype(jnp.bfloat16))
    return wps


# ----------------------------------------------------------------------------
# Kernel 1: fused multi-layer 1x1-conv / FC chain on the MXU.
#           Unpadded (tm, K) activations streamed in, padded + cast to bf16 in
#           VMEM, bf16 operands with f32 accumulation, relu on all but last.
# ----------------------------------------------------------------------------
def _make_fused_mlp_kernel(num_layers, k_in):
    def kernel(x_ref, *refs):
        w_refs = refs[:num_layers]
        o_ref = refs[num_layers]
        xpad_ref = refs[num_layers + 1]
        tm = x_ref.shape[0]
        lane = jax.lax.broadcasted_iota(jnp.int32, (tm, PADC), 1)
        # zero pad lanes + bias lane (1.0 at lane k_in), then drop the data in
        xpad_ref[...] = jnp.where(lane == k_in, 1.0, 0.0).astype(jnp.bfloat16)
        xpad_ref[:, :k_in] = x_ref[...].astype(jnp.bfloat16)
        h = xpad_ref[...]
        for l in range(num_layers):
            acc = jnp.dot(h, w_refs[l][...], preferred_element_type=jnp.float32)
            if l < num_layers - 1:
                h = jnp.maximum(acc, 0.0).astype(jnp.bfloat16)   # f32 relu, bf16 storage
            else:
                h = acc
        o_ref[...] = h.astype(o_ref.dtype)
    return kernel


def fused_mlp_pallas(x, weights, biases, *, tm=2048, out_dtype=jnp.float32,
                     ones_lane_in_output=False):
    """x: (M, K) unpadded.  Returns (Mp, PADC), Mp >= M rounded to tile size."""
    M, K = x.shape
    num_layers = len(weights)
    assert K == weights[0].shape[0]
    wps = _fold_weights(weights, biases, ones_lane_in_output)

    # >=2 blocks when possible (megacore), rows a multiple of 8, cdiv grid
    tm = _round_up(min(tm, _round_up(pl.cdiv(M, 2), 8)), 8)
    grid_m = pl.cdiv(M, tm)
    Mp = grid_m * tm
    if Mp != M:
        x = jnp.concatenate([x, jnp.zeros((Mp - M, K), x.dtype)], axis=0)

    in_specs = [pl.BlockSpec((tm, K), lambda i: (i, 0))]
    in_specs += [pl.BlockSpec((PADC, PADC), lambda i: (0, 0)) for _ in range(num_layers)]
    # TODO(synk): pipeline_mode=pl.Buffered(1) on the constant weight operands
    # would shave a little VMEM; left at defaults for robustness.

    out = pl.pallas_call(
        _make_fused_mlp_kernel(num_layers, K),
        out_shape=jax.ShapeDtypeStruct((Mp, PADC), out_dtype),
        grid=(grid_m,),
        in_specs=in_specs,
        out_specs=pl.BlockSpec((tm, PADC), lambda i: (i, 0)),
        scratch_shapes=[pltpu.VMEM((tm, PADC), jnp.bfloat16)],
        compiler_params=pltpu.CompilerParams(dimension_semantics=("parallel",)),
    )(x, *wps)
    return out


# ----------------------------------------------------------------------------
# Kernel 2: QDTrack embed head with the feature gather folded into the
#           pallas_call (scalar-prefetched row indices drive the DMA).
# ----------------------------------------------------------------------------
def _make_embed_kernel(num_layers, tb):
    def kernel(idx_ref, feat_ref, *refs):
        del idx_ref                      # consumed by the index maps
        w_refs = refs[:num_layers]
        o_ref = refs[num_layers]
        pooled_ref = refs[num_layers + 1]
        j = pl.program_id(1)
        # gathered bf16 feature row; lane CF already carries the 1.0 bias lane
        pooled_ref[pl.ds(j, 1), :] = feat_ref[0]

        @pl.when(j == tb - 1)
        def _():
            h = pooled_ref[...]
            for l in range(num_layers):
                acc = jnp.dot(h, w_refs[l][...], preferred_element_type=jnp.float32)
                if l < num_layers - 1:
                    h = jnp.maximum(acc, 0.0).astype(jnp.bfloat16)
                else:
                    h = acc
            o_ref[...] = h.astype(o_ref.dtype)
    return kernel


def embed_head_pallas(feats_flat, row_idx, weights, biases, *, tb=NPAD):
    """feats_flat: (R, PADC) bf16 rows (with 1.0 bias lane); row_idx: (M,) int32."""
    R = feats_flat.shape[0]
    M = row_idx.shape[0]
    assert M % tb == 0
    num_layers = len(weights)
    wps = _fold_weights(weights, biases, False)
    n_last = weights[-1].shape[1]
    feats3d = feats_flat.reshape(R, 1, PADC)   # row-gather via block index == row

    out = pl.pallas_call(
        _make_embed_kernel(num_layers, tb),
        out_shape=jax.ShapeDtypeStruct((M, PADC), jnp.float32),
        grid_spec=pltpu.PrefetchScalarGridSpec(
            num_scalar_prefetch=1,
            grid=(M // tb, tb),
            in_specs=[pl.BlockSpec((1, 1, PADC),
                                   lambda i, j, idx: (idx[i * tb + j], 0, 0))]
                     + [pl.BlockSpec((PADC, PADC), lambda i, j, idx: (0, 0))
                        for _ in range(num_layers)],
            out_specs=pl.BlockSpec((tb, PADC), lambda i, j, idx: (i, 0)),
            scratch_shapes=[pltpu.VMEM((tb, PADC), jnp.bfloat16)]),
        compiler_params=pltpu.CompilerParams(
            dimension_semantics=("parallel", "arbitrary")),
    )(row_idx, feats3d, *wps)
    return out[:, :n_last]


# ----------------------------------------------------------------------------
# Kernel 3: per-camera box geometry.  Intrinsics are composed into the
#           extrinsic transform at scalar level; 8 corners live on sublanes.
# ----------------------------------------------------------------------------
def geometry_kernel(boxes_ref, g2c_ref, intr_ref, hw_ref, out_ref):
    # boxes_ref : (12, NPAD) VMEM rows: cx cy cz dx dy dz qw qx qy qz valid pad
    # g2c_ref   : (num_cams, 16) SMEM  (row-major 4x4 global->camera, ROS frame)
    # intr_ref  : (num_cams, 9)  SMEM  (row-major 3x3 intrinsics)
    # hw_ref    : (num_cams, 2)  SMEM  (H, W) as float32
    # out_ref   : (8, NPAD) VMEM rows: x1 y1 x2 y2 area z_cam mask pad
    c = pl.program_id(0)

    # ---- scalar-unit precompute: fold K into the extrinsics ----------------
    R = [[g2c_ref[c, 4 * i + j] for j in range(3)] for i in range(3)]
    t = [g2c_ref[c, 4 * i + 3] for i in range(3)]
    # ROS camera frame -> OpenCV camera frame: x_cv=-y, y_cv=-z, z_cv=x
    AR = [[-R[1][0], -R[1][1], -R[1][2]],
          [-R[2][0], -R[2][1], -R[2][2]],
          [R[0][0], R[0][1], R[0][2]]]
    At = [-t[1], -t[2], t[0]]
    Kc = [[intr_ref[c, 3 * i + j] for j in range(3)] for i in range(3)]
    P = [[Kc[i][0] * AR[0][j] + Kc[i][1] * AR[1][j] + Kc[i][2] * AR[2][j]
          for j in range(3)] for i in range(3)]
    pt = [Kc[i][0] * At[0] + Kc[i][1] * At[1] + Kc[i][2] * At[2] for i in range(3)]
    Himg = hw_ref[c, 0]
    Wimg = hw_ref[c, 1]

    cx = boxes_ref[0:1, :]
    cy = boxes_ref[1:2, :]
    cz = boxes_ref[2:3, :]
    dx = boxes_ref[3:4, :]
    dy = boxes_ref[4:5, :]
    dz = boxes_ref[5:6, :]
    qw = boxes_ref[6:7, :]
    qx = boxes_ref[7:8, :]
    qy = boxes_ref[8:9, :]
    qz = boxes_ref[9:10, :]
    valid = boxes_ref[10:11, :]

    qn = jax.lax.rsqrt(qw * qw + qx * qx + qy * qy + qz * qz + 1e-12)
    qw, qx, qy, qz = qw * qn, qx * qn, qy * qn, qz * qn

    # quaternion -> rotation matrix (global / ROS frame), (1, NPAD) tiles
    Rb = [[1 - 2 * (qy * qy + qz * qz), 2 * (qx * qy - qz * qw), 2 * (qx * qz + qy * qw)],
          [2 * (qx * qy + qz * qw), 1 - 2 * (qx * qx + qz * qz), 2 * (qy * qz - qx * qw)],
          [2 * (qx * qz - qy * qw), 2 * (qy * qz + qx * qw), 1 - 2 * (qx * qx + qy * qy)]]

    # Mv = P @ Rb and d = P @ ctr + pt : all at (1, NPAD)
    Mv = [[P[i][0] * Rb[0][k] + P[i][1] * Rb[1][k] + P[i][2] * Rb[2][k]
           for k in range(3)] for i in range(3)]
    d = [P[i][0] * cx + P[i][1] * cy + P[i][2] * cz + pt[i] for i in range(3)]
    # camera-frame depth of the box center (OpenCV z == ROS x of cam frame)
    zc = AR[2][0] * cx + AR[2][1] * cy + AR[2][2] * cz + At[2]

    # fold half-dims into the corner coefficients (still (1, NPAD))
    hx, hy, hz = 0.5 * dx, 0.5 * dy, 0.5 * dz
    A0 = [Mv[i][0] * hx for i in range(3)]
    A1 = [Mv[i][1] * hy for i in range(3)]
    A2 = [Mv[i][2] * hz for i in range(3)]

    # 8 corner sign combinations on the sublane axis -> (8, NPAD) tiles
    corner = jax.lax.broadcasted_iota(jnp.int32, (8, NPAD), 0)
    sx = jnp.where((corner & 4) > 0, 1.0, -1.0).astype(jnp.float32)
    sy = jnp.where((corner & 2) > 0, 1.0, -1.0).astype(jnp.float32)
    sz = jnp.where((corner & 1) > 0, 1.0, -1.0).astype(jnp.float32)

    p0 = A0[0] * sx + A1[0] * sy + A2[0] * sz + d[0]
    p1 = A0[1] * sx + A1[1] * sy + A2[1] * sz + d[1]
    p2 = A0[2] * sx + A1[2] * sy + A2[2] * sz + d[2]

    # clamp depth to +eps (reference semantics); EUP reciprocal, two multiplies
    inv = pl.reciprocal(jnp.maximum(p2, 1e-6), approx=True)
    u = p0 * inv
    v = p1 * inv

    xmin = jnp.min(u, axis=0, keepdims=True)   # (1, NPAD), XLU sublane reduce
    xmax = jnp.max(u, axis=0, keepdims=True)
    ymin = jnp.min(v, axis=0, keepdims=True)
    ymax = jnp.max(v, axis=0, keepdims=True)

    # bbox_clip
    x1 = jnp.clip(xmin, 0.0, Wimg - 1.0)
    y1 = jnp.clip(ymin, 0.0, Himg - 1.0)
    x2 = jnp.clip(xmax, 0.0, Wimg - 1.0)
    y2 = jnp.clip(ymax, 0.0, Himg - 1.0)
    area = (x2 - x1) * (y2 - y1)

    mask = (zc > 0.0) & (area > 0.0) & (area < (Himg - 1.0) * (Wimg - 1.0)) & (valid > 0.5)
    maskf = mask.astype(jnp.float32)

    # single full-tile (8, NPAD) store
    out_ref[...] = jnp.concatenate(
        [x1, y1, x2, y2, area, zc, maskf, jnp.zeros_like(x1)], axis=0)


def geometry_pallas(boxes_soa, g2c, intrinsics, images_hw, num_cams):
    g2c_flat = g2c.reshape(num_cams, 16).astype(jnp.float32)
    intr_flat = intrinsics.reshape(num_cams, 9).astype(jnp.float32)
    hw = jnp.asarray(images_hw, jnp.float32).reshape(num_cams, 2)
    return pl.pallas_call(
        geometry_kernel,
        out_shape=jax.ShapeDtypeStruct((num_cams, 8, NPAD), jnp.float32),
        grid=(num_cams,),
        in_specs=[
            pl.BlockSpec((12, NPAD), lambda c: (0, 0)),
            pl.BlockSpec(memory_space=pltpu.MemorySpace.SMEM),
            pl.BlockSpec(memory_space=pltpu.MemorySpace.SMEM),
            pl.BlockSpec(memory_space=pltpu.MemorySpace.SMEM),
        ],
        out_specs=pl.BlockSpec((None, 8, NPAD), lambda c: (c, 0, 0)),
        compiler_params=pltpu.CompilerParams(dimension_semantics=("parallel",)),
    )(boxes_soa, g2c_flat, intr_flat, hw)


# ----------------------------------------------------------------------------
# Kernel 4: duplicate removal.  i axis striped over a parallel grid; the j axis
#           is consumed in 8-sublane chunks from a host-side transposed SoA, so
#           no (M, M) intermediates and no in-kernel transpose.
# ----------------------------------------------------------------------------
def _make_dedup_kernel(nchunks):
    def kernel(a_ref, b_ref, keep_ref):
        # a_ref  : (8, NPAD) i-strip, rows: cx cy cz area valid 0 0 0 (box=lanes)
        # b_ref  : (M, 8) j-side SoA (transposed host-side), cols as above
        # keep_ref: (1, NPAD)
        cx_i = a_ref[0:1, :]
        cy_i = a_ref[1:2, :]
        cz_i = a_ref[2:3, :]
        ai = a_ref[3:4, :]
        vi = a_ref[4:5, :]

        def body(cidx, dropped):
            off = pl.multiple_of(cidx * 8, 8)
            blk = b_ref[pl.ds(off, 8), :]                       # (8, 8) j chunk
            same = ((blk[:, 0:1] == cx_i) & (blk[:, 1:2] == cy_i)
                    & (blk[:, 2:3] == cz_i))                    # (8, NPAD)
            drop = same & (blk[:, 3:4] > ai) & (blk[:, 4:5] > 0.5)
            hit = jnp.max(drop.astype(jnp.float32), axis=0, keepdims=True)
            return jnp.maximum(dropped, hit)

        dropped = jax.lax.fori_loop(0, nchunks, body,
                                    jnp.zeros((1, NPAD), jnp.float32))
        keep_ref[...] = jnp.where((vi > 0.5) & (dropped < 0.5), 1.0, 0.0)
    return kernel


def dedup_pallas(a_soa, b_soa):
    M = a_soa.shape[1]
    assert M % NPAD == 0 and M % 8 == 0
    out = pl.pallas_call(
        _make_dedup_kernel(M // 8),
        out_shape=jax.ShapeDtypeStruct((1, M), jnp.float32),
        grid=(M // NPAD,),
        in_specs=[pl.BlockSpec((8, NPAD), lambda i: (0, i)),
                  pl.BlockSpec((M, 8), lambda i: (0, 0))],
        out_specs=pl.BlockSpec((1, NPAD), lambda i: (0, i)),
        compiler_params=pltpu.CompilerParams(dimension_semantics=("parallel",)),
    )(a_soa, b_soa)
    return out[0]


# ----------------------------------------------------------------------------
# Glue: backbone + FPN (synthetic, fused), embedding head, cc3dt box assembly,
#       simple frame-0 track graph.
# ----------------------------------------------------------------------------
def backbone_and_fpn(images_nhwc, params):
    # 1x1 convs commute with spatial subsampling, so subsample once (stride 4)
    # and run the whole channel MLP fused in one Pallas kernel (bf16 output).
    x = images_nhwc[:, ::4, ::4, :]
    B, H4, W4, C = x.shape
    feats = fused_mlp_pallas(
        x.reshape(B * H4 * W4, C),
        [params["w1"], params["w2"], params["w_fpn"]],
        [params["b1"], params["b2"], params["b_fpn"]],
        out_dtype=jnp.bfloat16, ones_lane_in_output=True)
    return feats, (H4, W4)


def embed_head(feats_flat, feat_hw, boxes_2d, cam_idx, params, img_hw):
    # TODO(synk): QDTrack ROIAlign replaced by box-center feature sampling.
    Hf, Wf = feat_hw
    H, W = img_hw
    cxp = jnp.nan_to_num(0.5 * (boxes_2d[:, 0] + boxes_2d[:, 2]))
    cyp = jnp.nan_to_num(0.5 * (boxes_2d[:, 1] + boxes_2d[:, 3]))
    ix = jnp.clip(jnp.floor(cxp / (W / Wf)), 0, Wf - 1).astype(jnp.int32)
    iy = jnp.clip(jnp.floor(cyp / (H / Hf)), 0, Hf - 1).astype(jnp.int32)
    row_idx = cam_idx.astype(jnp.int32) * (Hf * Wf) + iy * Wf + ix
    return embed_head_pallas(feats_flat, row_idx,
                             [params["we1"], params["we2"]],
                             [params["be1"], params["be2"]])


def build_cc3dt(boxes_soa, vel_soa):
    # rows 0-2 center, 3-5 dims reordered [5,3,4], 6-8 euler(rot matrix), 9-11 vel
    ctr = boxes_soa[0:3]
    dims = boxes_soa[jnp.array([5, 3, 4])]
    qw, qx, qy, qz = boxes_soa[6], boxes_soa[7], boxes_soa[8], boxes_soa[9]
    n = jnp.sqrt(qw * qw + qx * qx + qy * qy + qz * qz) + 1e-12
    qw, qx, qy, qz = qw / n, qx / n, qy / n, qz / n
    R00 = 1 - 2 * (qy * qy + qz * qz)
    R10 = 2 * (qx * qy + qz * qw)
    R20 = 2 * (qx * qz - qy * qw)
    R21 = 2 * (qy * qz + qx * qw)
    R22 = 1 - 2 * (qx * qx + qy * qy)
    roll = jnp.arctan2(R21, R22)
    pitch = jnp.arctan2(-R20, jnp.sqrt(R21 * R21 + R22 * R22))
    yaw = jnp.arctan2(R10, R00)
    # TODO(synk): exact vis4d rotation_matrix_yaw convention not bit-reproduced.
    return jnp.concatenate([ctr, dims, jnp.stack([roll, pitch, yaw]), vel_soa], axis=0)


def simple_track_graph(valid, scores, frame_id, obj_thr=0.1, init_thr=0.2):
    del frame_id  # TODO(synk): cross-frame association / motion model omitted.
    det_valid = valid & (scores > obj_thr)
    new_track = det_valid & (scores > init_thr)
    track_ids = jnp.where(new_track, jnp.cumsum(new_track.astype(jnp.int32)) - 1, -1)
    return det_valid, track_ids


def cc3dt_forward(images_nchw, images_hw, intrinsics, extrinsics, frame_id,
                  boxes_3d, class_ids, scores_3d, velocities, params):
    num_cams, _, H, W = images_nchw.shape
    N = boxes_3d.shape[0]

    # backbone + FPN (fused Pallas MLP, bf16 lane-dense features)
    feats_flat, feat_hw = backbone_and_fpn(
        jnp.transpose(images_nchw, (0, 2, 3, 1)), params)

    # inverse_rigid_transform
    R = extrinsics[:, :3, :3]
    t = extrinsics[:, :3, 3]
    Rt = jnp.swapaxes(R, 1, 2)
    tinv = -jnp.einsum("nij,nj->ni", Rt, t)
    top = jnp.concatenate([Rt, tinv[:, :, None]], axis=2)
    bottom = jnp.broadcast_to(jnp.array([[[0.0, 0.0, 0.0, 1.0]]]), (num_cams, 1, 4))
    g2c = jnp.concatenate([top, bottom], axis=1)

    # pad boxes into SoA layout
    boxes_soa = jnp.zeros((12, NPAD), jnp.float32)
    boxes_soa = boxes_soa.at[6, :].set(1.0)               # identity quat for pads
    boxes_soa = boxes_soa.at[0:10, :N].set(boxes_3d.T)
    boxes_soa = boxes_soa.at[10, :N].set(1.0)             # valid flag
    vel_soa = jnp.zeros((3, NPAD), jnp.float32).at[:, :N].set(velocities.T)

    # per-camera geometry kernel
    geo = geometry_pallas(boxes_soa, g2c, intrinsics, images_hw, num_cams)

    M = num_cams * NPAD
    boxes2d_all = jnp.transpose(geo[:, 0:4, :], (0, 2, 1)).reshape(M, 4)
    areas_all = geo[:, 4, :].reshape(M)
    mask_all = geo[:, 6, :].reshape(M) > 0.5

    cc3dt = build_cc3dt(boxes_soa, vel_soa)               # (12, NPAD)
    cc3dt_all = jnp.tile(cc3dt.T, (num_cams, 1))          # (M, 12)
    cam_ids_all = jnp.repeat(jnp.arange(num_cams), NPAD)
    scores_pad = jnp.zeros((NPAD,), jnp.float32).at[:N].set(scores_3d)
    class_pad = jnp.zeros((NPAD,), jnp.int32).at[:N].set(class_ids)
    scores_all = jnp.tile(scores_pad, num_cams)
    class_all = jnp.tile(class_pad, num_cams)

    # duplicate removal kernel (i side on lanes; j side as tiny transposed SoA)
    a_soa = jnp.concatenate([
        jnp.tile(boxes_soa[0:3, :], (1, num_cams)),       # centers (3, M)
        areas_all.reshape(1, M),
        mask_all.astype(jnp.float32).reshape(1, M),
        jnp.zeros((3, M), jnp.float32),
    ], axis=0)
    b_soa = a_soa.T                                       # (M, 8), bytes-trivial
    keep = dedup_pallas(a_soa, b_soa) > 0.5

    # QDTrack embeddings (gather fused into the embed MLP pallas_call)
    emb_all = embed_head(feats_flat, feat_hw, boxes2d_all, cam_ids_all,
                         params, (H, W))

    final_valid = mask_all & keep
    det_valid, track_ids = simple_track_graph(final_valid, scores_all, frame_id)

    return {
        "boxes_3d": cc3dt_all,        # (M, 12) padded; filter with `valid`
        "boxes_2d": boxes2d_all,      # (M, 4)
        "scores": scores_all,         # (M,)
        "class_ids": class_all,       # (M,)
        "camera_ids": cam_ids_all,    # (M,)
        "embeddings": emb_all,        # (M, embed_dim)
        "valid": det_valid,           # (M,) bool
        "track_ids": track_ids,       # (M,) int32, -1 = no track
    }


# ----------------------------------------------------------------------------
# Main
# ----------------------------------------------------------------------------
if __name__ == "__main__":
    key = jax.random.PRNGKey(0)
    ks = jax.random.split(key, 12)

    num_cams, H, W = 2, 16, 16
    N = 6

    images = jax.random.normal(ks[0], (num_cams, 3, H, W), jnp.float32)   # NCHW
    images_hw = [(H, W)] * num_cams

    intrinsics = jnp.tile(
        jnp.array([[20.0, 0.0, 8.0], [0.0, 20.0, 8.0], [0.0, 0.0, 1.0]], jnp.float32),
        (num_cams, 1, 1))

    ang = 0.1
    Rz = jnp.array([[jnp.cos(ang), -jnp.sin(ang), 0.0],
                    [jnp.sin(ang), jnp.cos(ang), 0.0],
                    [0.0, 0.0, 1.0]], jnp.float32)
    E0 = jnp.eye(4, dtype=jnp.float32)
    E1 = jnp.eye(4, dtype=jnp.float32).at[:3, :3].set(Rz).at[:3, 3].set(
        jnp.array([0.5, 0.2, 0.0], jnp.float32))
    extrinsics = jnp.stack([E0, E1])                                       # cam -> global

    centers = jnp.stack([
        jax.random.uniform(ks[1], (N,), minval=4.0, maxval=10.0),          # forward (ROS x)
        jax.random.uniform(ks[2], (N,), minval=-2.0, maxval=2.0),
        jax.random.uniform(ks[3], (N,), minval=-1.0, maxval=1.0)], axis=1)
    dims = jax.random.uniform(ks[4], (N, 3), minval=0.5, maxval=2.0)
    quat = jax.random.normal(ks[5], (N, 4))
    quat = quat / jnp.linalg.norm(quat, axis=1, keepdims=True)
    boxes_3d = jnp.concatenate([centers, dims, quat], axis=1)              # (N, 10)
    class_ids = jax.random.randint(ks[6], (N,), 0, 3)
    scores_3d = jax.random.uniform(ks[7], (N,), minval=0.05, maxval=1.0)
    velocities = 0.1 * jax.random.normal(ks[8], (N, 3))

    C1, C2, CF, E1d, EMB = 16, 32, 32, 64, 32
    pk = jax.random.split(ks[9], 10)
    params = {
        "w1": 0.1 * jax.random.normal(pk[0], (3, C1)), "b1": jnp.zeros((C1,)),
        "w2": 0.1 * jax.random.normal(pk[1], (C1, C2)), "b2": jnp.zeros((C2,)),
        "w_fpn": 0.1 * jax.random.normal(pk[2], (C2, CF)), "b_fpn": jnp.zeros((CF,)),
        "we1": 0.1 * jax.random.normal(pk[3], (CF, E1d)), "be1": jnp.zeros((E1d,)),
        "we2": 0.1 * jax.random.normal(pk[4], (E1d, EMB)), "be2": jnp.zeros((EMB,)),
    }

    out = cc3dt_forward(images, images_hw, intrinsics, extrinsics, 0,
                        boxes_3d, class_ids, scores_3d, velocities, params)
    jax.block_until_ready(out)
    print("KERNEL_OK")
</pallas_src>

<mosaic_0001>
module attributes {stable_mosaic.version = 11 : i64} {
  func.func @kernel(%arg0: i32, %arg1: memref<16x3xf32, #tpu.memory_space<vmem>>, %arg2: memref<128x128xbf16, #tpu.memory_space<vmem>>, %arg3: memref<128x128xbf16, #tpu.memory_space<vmem>>, %arg4: memref<128x128xbf16, #tpu.memory_space<vmem>>, %arg5: memref<16x128xbf16, #tpu.memory_space<vmem>>, %arg6: memref<16x128xbf16, #tpu.memory_space<vmem>>) attributes {dimension_semantics = [#tpu.dimension_semantics<parallel>], iteration_bounds = array<i64: 2>, scalar_prefetch = 0 : i64, scratch_operands = 1 : i64, tpu.core_type = #tpu.core_type<tc>, window_params = [{transform_indices = @transform_0, window_bounds = array<i64: 16, 3>}, {pipeline_mode = #tpu.pipeline_mode<synchronous>, transform_indices = @transform_1, window_bounds = array<i64: 128, 128>}, {pipeline_mode = #tpu.pipeline_mode<synchronous>, transform_indices = @transform_2, window_bounds = array<i64: 128, 128>}, {pipeline_mode = #tpu.pipeline_mode<synchronous>, transform_indices = @transform_3, window_bounds = array<i64: 128, 128>}, {transform_indices = @transform_4, window_bounds = array<i64: 16, 128>}]} {
    %0 = tpu.iota {dimensions = array<i32: 1>} : vector<16x128xi32>
    %c3_i32 = arith.constant 3 : i32
    %1 = vector.broadcast %c3_i32 : i32 to vector<16x128xi32>
    %2 = arith.cmpi eq, %0, %1 : vector<16x128xi32>
    %cst = arith.constant 1.000000e+00 : f32
    %cst_0 = arith.constant 0.000000e+00 : f32
    %3 = vector.broadcast %cst : f32 to vector<16x128xf32>
    %4 = vector.broadcast %cst_0 : f32 to vector<16x128xf32>
    %5 = arith.select %2, %3, %4 : vector<16x128xi1>, vector<16x128xf32>
    %6 = arith.truncf %5 : vector<16x128xf32> to vector<16x128xbf16>
    %c0 = arith.constant 0 : index
    %c0_1 = arith.constant 0 : index
    %7 = vector.load %arg6[%c0, %c0_1] : memref<16x128xbf16, #tpu.memory_space<vmem>>, vector<16x128xbf16>
    tpu.vector_store %arg6[%c0, %c0_1], %6 {strides = array<i32>} : memref<16x128xbf16, #tpu.memory_space<vmem>>, vector<16x128xbf16>,
    %c0_2 = arith.constant 0 : index
    %c0_3 = arith.constant 0 : index
    %8 = vector.load %arg1[%c0_2, %c0_3] : memref<16x3xf32, #tpu.memory_space<vmem>>, vector<16x3xf32>
    %9 = arith.truncf %8 : vector<16x3xf32> to vector<16x3xbf16>
    %c0_4 = arith.constant 0 : index
    %c0_5 = arith.constant 0 : index
    %10 = vector.load %arg6[%c0_4, %c0_5] : memref<16x128xbf16, #tpu.memory_space<vmem>>, vector<16x3xbf16>
    tpu.vector_store %arg6[%c0_4, %c0_5], %9 {strides = array<i32>} : memref<16x128xbf16, #tpu.memory_space<vmem>>, vector<16x3xbf16>,
    %c0_6 = arith.constant 0 : index
    %c0_7 = arith.constant 0 : index
    %11 = vector.load %arg6[%c0_6, %c0_7] : memref<16x128xbf16, #tpu.memory_space<vmem>>, vector<16x128xbf16>
    %c0_8 = arith.constant 0 : index
    %c0_9 = arith.constant 0 : index
    %12 = vector.load %arg2[%c0_8, %c0_9] : memref<128x128xbf16, #tpu.memory_space<vmem>>, vector<128x128xbf16>
    %cst_10 = arith.constant dense<0.000000e+00> : vector<16x128xf32>
    %13 = tpu.matmul %11, %12, %cst_10 {dimension_numbers = #tpu.dot_dimension_numbers<[1], [0], [0], [1], [0, 0, 1, 1], [], []>} : vector<16x128xbf16>, vector<128x128xbf16>, vector<16x128xf32> -> vector<16x128xf32>
    %cst_11 = arith.constant 0.000000e+00 : f32
    %14 = vector.broadcast %cst_11 : f32 to vector<16x128xf32>
    %15 = arith.maximumf %13, %14 : vector<16x128xf32>
    %16 = arith.truncf %15 : vector<16x128xf32> to vector<16x128xbf16>
    %c0_12 = arith.constant 0 : index
    %c0_13 = arith.constant 0 : index
    %17 = vector.load %arg3[%c0_12, %c0_13] : memref<128x128xbf16, #tpu.memory_space<vmem>>, vector<128x128xbf16>
    %cst_14 = arith.constant dense<0.000000e+00> : vector<16x128xf32>
    %18 = tpu.matmul %16, %17, %cst_14 {dimension_numbers = #tpu.dot_dimension_numbers<[1], [0], [0], [1], [0, 0, 1, 1], [], []>} : vector<16x128xbf16>, vector<128x128xbf16>, vector<16x128xf32> -> vector<16x128xf32>
    %cst_15 = arith.constant 0.000000e+00 : f32
    %19 = vector.broadcast %cst_15 : f32 to vector<16x128xf32>
    %20 = arith.maximumf %18, %19 : vector<16x128xf32>
    %21 = arith.truncf %20 : vector<16x128xf32> to vector<16x128xbf16>
    %c0_16 = arith.constant 0 : index
    %c0_17 = arith.constant 0 : index
    %22 = vector.load %arg4[%c0_16, %c0_17] : memref<128x128xbf16, #tpu.memory_space<vmem>>, vector<128x128xbf16>
    %cst_18 = arith.constant dense<0.000000e+00> : vector<16x128xf32>
    %23 = tpu.matmul %21, %22, %cst_18 {dimension_numbers = #tpu.dot_dimension_numbers<[1], [0], [0], [1], [0, 0, 1, 1], [], []>} : vector<16x128xbf16>, vector<128x128xbf16>, vector<16x128xf32> -> vector<16x128xf32>
    %24 = arith.truncf %23 : vector<16x128xf32> to vector<16x128xbf16>
    %c0_19 = arith.constant 0 : index
    %c0_20 = arith.constant 0 : index
    %25 = vector.load %arg5[%c0_19, %c0_20] : memref<16x128xbf16, #tpu.memory_space<vmem>>, vector<16x128xbf16>
    tpu.vector_store %arg5[%c0_19, %c0_20], %24 {strides = array<i32>} : memref<16x128xbf16, #tpu.memory_space<vmem>>, vector<16x128xbf16>,
    return
  }
  func.func @transform_0(%arg0: i32) -> (i32, i32) {
    %c0_i32 = arith.constant 0 : i32
    %c0_i32_0 = arith.constant 0 : i32
    return %arg0, %c0_i32 : i32, i32
  }
  func.func @transform_1(%arg0: i32) -> (i32, i32) {
    %c0_i32 = arith.constant 0 : i32
    %c0_i32_0 = arith.constant 0 : i32
    %c0_i32_1 = arith.constant 0 : i32
    return %c0_i32, %c0_i32_0 : i32, i32
  }
  func.func @transform_2(%arg0: i32) -> (i32, i32) {
    %c0_i32 = arith.constant 0 : i32
    %c0_i32_0 = arith.constant 0 : i32
    %c0_i32_1 = arith.constant 0 : i32
    return %c0_i32, %c0_i32_0 : i32, i32
  }
  func.func @transform_3(%arg0: i32) -> (i32, i32) {
    %c0_i32 = arith.constant 0 : i32
    %c0_i32_0 = arith.constant 0 : i32
    %c0_i32_1 = arith.constant 0 : i32
    return %c0_i32, %c0_i32_0 : i32, i32
  }
  func.func @transform_4(%arg0: i32) -> (i32, i32) {
    %c0_i32 = arith.constant 0 : i32
    %c0_i32_0 = arith.constant 0 : i32
    return %arg0, %c0_i32 : i32, i32
  }
}

</mosaic_0001>

<llo_original>
// kernel: tpu_custom_call.1
$region0: #{tpu_custom_call.1}
  #allocation0 [shape = 'u32[]', space=smem, size = 0x4, offset = 0x4, fixed_abs, tag = 'smem constant byte address 0x4 - core index']
  #allocation1 [shape = 'u32[144,128]{1,0:T(1,128)}', space=vmem, size = 0x12000, scoped, tag = 'internal scratch']
  #allocation2 [shape = 'bf16[16,128]{1,0:T(16,128)(2,1)}', space=vmem, size = 0x1000, scoped, tag = 'scratch operand']
  %s0 = inlined_call_operand.vmem [shape: f32[32,3], index: 0, kind: input, shape index: {}]
  %s1 = inlined_call_operand.hbm [shape: bf16[128,128], index: 1, kind: input, shape index: {}]
  %s2 = inlined_call_operand.hbm [shape: bf16[128,128], index: 2, kind: input, shape index: {}]
  %s3 = inlined_call_operand.hbm [shape: bf16[128,128], index: 3, kind: input, shape index: {}]
  %s4 = inlined_call_operand.hbm [shape: bf16[32,128], index: 4, kind: output, shape index: {}]
  %s5 = sld [smem:[#allocation0]]
  $region61: #{tpu_custom_call.1} parent=0
    _
  %s7 = ssub.s32 1, %s5
  %s8 = scalar_select 0, %s7, %s5
  $region1: #{tpu_custom_call.1} parent=0
    #allocation3 [shape = 'u8[32768]{0}', space=vmem, size = 0x8000, scoped, tag = 'input window, operand 1, single buffered']
    #allocation4 [shape = 's32[2]{0}', space=sflag, size = 0x8, scoped, tag = 'scoped memory for tpu_custom_call.1']
    #allocation5 [shape = 's32[2]{0}', space=sflag, size = 0x8, scoped, tag = 'scoped memory for tpu_custom_call.1']
    #allocation6 [shape = 'u8[32768]{0}', space=vmem, size = 0x8000, scoped, tag = 'input window, operand 2, single buffered']
    #allocation7 [shape = 's32[1]{0}', space=sflag, size = 0x4, scoped, tag = 'scoped memory for tpu_custom_call.1']
    #allocation8 [shape = 'u8[32768]{0}', space=vmem, size = 0x8000, scoped, tag = 'input window, operand 3, single buffered']
    #allocation9 [shape = 'u8[8192]{0}', space=vmem, size = 0x2000, scoped, tag = 'output window, operand 0']
    %9 = vsyncpa [#allocation4], 0
    %10 = vsyncpa [#allocation7], 0
    %11 = vsyncpa [#allocation5], 0
    %s12 = scalar_lea.sflag [#allocation5], 1
    %13 = vsyncpa %s12, 0
    loop: start=0, step=1, limit=4
    $region2: #{tpu_custom_call.1} parent=1 // loop_pre_header
      _
    $region3: #{tpu_custom_call.1} parent=1 // loop_header
      %s15 = sphi 0, %s19
      %p16 = scmp.ge.s32.totalorder %s15, 4
      %s25 = sphi 0, %s27
      %s28 = sphi 0, %s25
      %s29 = sphi 0, %s28
      %s45 = sphi 0, %s29
      %s49 = sphi 0, %s49
      %s51 = sphi 0, %s49
      %s52 = sphi 0, %s51
      %s66 = sphi 0, %s52
      %s70 = sphi 0, %s70
      %s72 = sphi 0, %s70
      %s73 = sphi 0, %s72
      %s87 = sphi 0, %s73
      %s91 = sphi 0, %s91
      %s93 = sphi 0, %s91
      %s94 = sphi 0, %s93
      %s108 = sphi 0, %s94
      %s114 = sphi 0, %s116
      %s117 = sphi 0, %s114
      %s118 = sphi 0, %s117
      %s134 = sphi 0, %s118
    $region4: #{tpu_custom_call.1} parent=1 // loop_header_branch
      %18 = sbr.rel (%p16) target = $region8
    $region5: #{tpu_custom_call.1} parent=1 // loop_body
      %s20 = ssub.s32 %s15, 1
      %s21 = ssub.s32 %s15, 2
      %s22 = sadd.s32 %s15, 1
      %s23 = ssub.s32 %s15, %s22
      %p24 = scmp.eq.s32.totalorder %s23, 0
      %s26 = sadd.s32 %s25, 1
      %s27 = scalar_select %p24, %s25, %s26
      %p30 = pneg %p24
      %p31 = scmp.eq.s32.totalorder %s15, 1
      %p32 = por %p30, %p31
      %p33 = scmp.ne.s32.totalorder %s25, %s28
      %p34 = scmp.eq.s32.totalorder %s15, 0
      %p35 = por %p33, %p34
      %p36 = scmp.ne.s32.totalorder %s25, %s28
      %p37 = scmp.eq.s32.totalorder %s20, 1
      %p38 = por %p36, %p37
      %p39 = scmp.ne.s32.totalorder %s28, %s29
      %p40 = scmp.eq.s32.totalorder %s20, 0
      %p41 = por %p39, %p40
      %p42 = scmp.ne.s32.totalorder %s28, %s29
      %p43 = scmp.eq.s32.totalorder %s21, 1
      %p44 = por %p42, %p43
      %p46 = scmp.ne.s32.totalorder %s29, %s45
      %p47 = scmp.eq.s32.totalorder %s21, 0
      %p48 = por %p46, %p47
      %s50 = sadd.s32 %s49, 1
      %p53 = scmp.eq.s32.totalorder %s15, 1
      %p54 = scmp.ne.s32.totalorder %s49, %s51
      %p55 = scmp.eq.s32.totalorder %s15, 0
      %p56 = por %p54, %p55
      %p57 = scmp.ne.s32.totalorder %s49, %s51
      %p58 = scmp.eq.s32.totalorder %s20, 1
      %p59 = por %p57, %p58
      %p60 = scmp.ne.s32.totalorder %s51, %s52
      %p61 = scmp.eq.s32.totalorder %s20, 0
      %p62 = por %p60, %p61
      %p63 = scmp.ne.s32.totalorder %s51, %s52
      %p64 = scmp.eq.s32.totalorder %s21, 1
      %p65 = por %p63, %p64
      %p67 = scmp.ne.s32.totalorder %s52, %s66
      %p68 = scmp.eq.s32.totalorder %s21, 0
      %p69 = por %p67, %p68
      %s71 = sadd.s32 %s70, 1
      %p74 = scmp.eq.s32.totalorder %s15, 1
      %p75 = scmp.ne.s32.totalorder %s70, %s72
      %p76 = scmp.eq.s32.totalorder %s15, 0
      %p77 = por %p75, %p76
      %p78 = scmp.ne.s32.totalorder %s70, %s72
      %p79 = scmp.eq.s32.totalorder %s20, 1
      %p80 = por %p78, %p79
      %p81 = scmp.ne.s32.totalorder %s72, %s73
      %p82 = scmp.eq.s32.totalorder %s20, 0
      %p83 = por %p81, %p82
      %p84 = scmp.ne.s32.totalorder %s72, %s73
      %p85 = scmp.eq.s32.totalorder %s21, 1
      %p86 = por %p84, %p85
      %p88 = scmp.ne.s32.totalorder %s73, %s87
      %p89 = scmp.eq.s32.totalorder %s21, 0
      %p90 = por %p88, %p89
      %s92 = sadd.s32 %s91, 1
      %p95 = scmp.eq.s32.totalorder %s15, 1
      %p96 = scmp.ne.s32.totalorder %s91, %s93
      %p97 = scmp.eq.s32.totalorder %s15, 0
      %p98 = por %p96, %p97
      %p99 = scmp.ne.s32.totalorder %s91, %s93
      %p100 = scmp.eq.s32.totalorder %s20, 1
      %p101 = por %p99, %p100
      %p102 = scmp.ne.s32.totalorder %s93, %s94
      %p103 = scmp.eq.s32.totalorder %s20, 0
      %p104 = por %p102, %p103
      %p105 = scmp.ne.s32.totalorder %s93, %s94
      %p106 = scmp.eq.s32.totalorder %s21, 1
      %p107 = por %p105, %p106
      %p109 = scmp.ne.s32.totalorder %s94, %s108
      %p110 = scmp.eq.s32.totalorder %s21, 0
      %p111 = por %p109, %p110
      %s112 = ssub.s32 %s15, %s22
      %p113 = scmp.eq.s32.totalorder %s112, 0
      %s115 = sadd.s32 %s114, 1
      %s116 = scalar_select %p113, %s114, %s115
      %p119 = pneg %p113
      %p120 = scmp.eq.s32.totalorder %s15, 1
      %p121 = por %p119, %p120
      %p122 = scmp.ne.s32.totalorder %s114, %s117
      %p123 = scmp.eq.s32.totalorder %s15, 0
      %p124 = por %p122, %p123
      %p125 = scmp.ne.s32.totalorder %s114, %s117
      %p126 = scmp.eq.s32.totalorder %s20, 1
      %p127 = por %p125, %p126
      %p128 = scmp.ne.s32.totalorder %s117, %s118
      %p129 = scmp.eq.s32.totalorder %s20, 0
      %p130 = por %p128, %p129
      %p131 = scmp.ne.s32.totalorder %s117, %s118
      %p132 = scmp.eq.s32.totalorder %s21, 1
      %p133 = por %p131, %p132
      %p135 = scmp.ne.s32.totalorder %s118, %s134
      %p136 = scmp.eq.s32.totalorder %s21, 0
      %p137 = por %p135, %p136
      %p138 = scmp.le.s32.totalorder 1, %s15
      %p139 = scmp.lt.s32.totalorder %s15, 3
      %p140 = pnand %p138, %p139
      %p141 = pneg %p140
      // Predicated region
      $region9: #{tpu_custom_call.1} parent=5 // pred_check
        _
      $region10: #{tpu_custom_call.1} parent=5 // pred_check_branch
        %143 = sbr.rel (%p140) target = $region12
      $region11: #{tpu_custom_call.1} parent=5 // pred_region
        %s144 = ssub.s32 %s15, 1
        // Predicated region
        $region13: #{tpu_custom_call.1} parent=11 // pred_check
          %p145 = pneg %p62
        $region14: #{tpu_custom_call.1} parent=11 // pred_check_branch
          %147 = sbr.rel (%p145) target = $region16
        $region15: #{tpu_custom_call.1} parent=11 // pred_region
          %s149 = ssub.s32 1024, 1024
          %150 = vsyncadd [#allocation4], %s149
          %s151 = sshll.u32 [#allocation3], 4
          %s152 = int_to_ptr.vmem [resolvable:$true] %s151
          %157 = dma.hbm_to_vmem [thread:$0]  %s1, 1024, %s152, [#allocation4], 64, 64, 4
        $region16: #{tpu_custom_call.1} parent=11 // pred_fallthru
          _
        // Predicated region
        $region17: #{tpu_custom_call.1} parent=11 // pred_check
          %p158 = pneg %p83
        $region18: #{tpu_custom_call.1} parent=11 // pred_check_branch
          %160 = sbr.rel (%p158) target = $region20
        $region19: #{tpu_custom_call.1} parent=11 // pred_region
          %s162 = ssub.s32 1024, 1024
          %163 = vsyncadd [#allocation7], %s162
          %s164 = sshll.u32 [#allocation6], 4
          %s165 = int_to_ptr.vmem [resolvable:$true] %s164
          %170 = dma.hbm_to_vmem [thread:$0]  %s2, 1024, %s165, [#allocation7], 64, 64, 4
        $region20: #{tpu_custom_call.1} parent=11 // pred_fallthru
          _
        // Predicated region
        $region21: #{tpu_custom_call.1} parent=11 // pred_check
          %p171 = pneg %p104
        $region22: #{tpu_custom_call.1} parent=11 // pred_check_branch
          %173 = sbr.rel (%p171) target = $region24
        $region23: #{tpu_custom_call.1} parent=11 // pred_region
          %s175 = ssub.s32 1024, 1024
          %176 = vsyncadd [#allocation7], %s175
          %s177 = sshll.u32 [#allocation8], 4
          %s178 = int_to_ptr.vmem [resolvable:$true] %s177
          %183 = dma.hbm_to_vmem [thread:$0]  %s3, 1024, %s178, [#allocation7], 64, 64, 4
        $region24: #{tpu_custom_call.1} parent=11 // pred_fallthru
          _
      $region12: #{tpu_custom_call.1} parent=5 // pred_fallthru
        _
      %p184 = scmp.lt.s32.totalorder %s15, 2
      // Predicated region
      $region25: #{tpu_custom_call.1} parent=5 // pred_check
        %p185 = pneg %p184
      $region26: #{tpu_custom_call.1} parent=5 // pred_check_branch
        %187 = sbr.rel (%p185) target = $region28
      $region27: #{tpu_custom_call.1} parent=5 // pred_region
        // Predicated region
        $region29: #{tpu_custom_call.1} parent=27 // pred_check
          %p188 = pneg %p35
        $region30: #{tpu_custom_call.1} parent=27 // pred_check_branch
          %190 = sbr.rel (%p188) target = $region32
        $region31: #{tpu_custom_call.1} parent=27 // pred_region
          %s191 = smul.u32 2, %s15
          %p192 = scmp.lt.s32.totalorder %s191, 3
          %s193 = scalar_select %p192, %s191, 3
          %s194 = smul.addr %s193, 8
          %s195 = scalar_lea.vmem %s0, %s194
          %s196 = smul.u32 2, %s15
        $region32: #{tpu_custom_call.1} parent=27 // pred_fallthru
          _
      $region28: #{tpu_custom_call.1} parent=5 // pred_fallthru
        _
      %p197 = scmp.le.s32.totalorder 1, %s15
      %p198 = scmp.lt.s32.totalorder %s15, 3
      %p199 = pnand %p197, %p198
      %p200 = pneg %p199
      // Predicated region
      $region33: #{tpu_custom_call.1} parent=5 // pred_check
        _
      $region34: #{tpu_custom_call.1} parent=5 // pred_check_branch
        %202 = sbr.rel (%p199) target = $region36
      $region35: #{tpu_custom_call.1} parent=5 // pred_region
        %s203 = ssub.s32 %s15, 1
        // Predicated region
        $region37: #{tpu_custom_call.1} parent=35 // pred_check
          %p204 = pneg %p62
        $region38: #{tpu_custom_call.1} parent=35 // pred_check_branch
          %206 = sbr.rel (%p204) target = $region40
        $region39: #{tpu_custom_call.1} parent=35 // pred_region
          %207 = dma.done [#allocation4], 1024
        $region40: #{tpu_custom_call.1} parent=35 // pred_fallthru
          _
        // Predicated region
        $region41: #{tpu_custom_call.1} parent=35 // pred_check
          %p208 = pneg %p83
        $region42: #{tpu_custom_call.1} parent=35 // pred_check_branch
          %210 = sbr.rel (%p208) target = $region44
        $region43: #{tpu_custom_call.1} parent=35 // pred_region
          %211 = dma.done [#allocation7], 1024
        $region44: #{tpu_custom_call.1} parent=35 // pred_fallthru
          _
        // Predicated region
        $region45: #{tpu_custom_call.1} parent=35 // pred_check
          %p212 = pneg %p104
        $region46: #{tpu_custom_call.1} parent=35 // pred_check_branch
          %214 = sbr.rel (%p212) target = $region48
        $region47: #{tpu_custom_call.1} parent=35 // pred_region
          %215 = dma.done [#allocation7], 1024
        $region48: #{tpu_custom_call.1} parent=35 // pred_fallthru
          _
        %s216 = smul.u32 2, %s20
        %p217 = scmp.lt.s32.totalorder %s216, 3
        %s218 = scalar_select %p217, %s216, 3
        %s219 = smul.addr %s218, 8
        %s220 = scalar_lea.vmem %s0, %s219
        %p221 = pneg %p41
        %p222 = pneg %p38
        %p223 = pneg %p62
        %p224 = pneg %p59
        %p225 = pneg %p83
        %p226 = pneg %p80
        %p227 = pneg %p104
        %p228 = pneg %p101
        %p229 = pneg %p130
        %p230 = pneg %p127
        %s231 = sand.u32 %s117, 1
        %s232 = scalar_lea.sflag [#allocation5], %s231
        %s233 = sand.u32 %s117, 1
        %s234 = smul.addr %s233, 8
        %s235 = scalar_lea.vmem [#allocation9], %s234
        %s236 = smul.u32 2, %s20
        %p237 = scmp.lt.s32.totalorder %s236, 3
        %s238 = scalar_select %p237, %s236, 3
        %s239 = smul.addr %s238, 8
        %s240 = scalar_lea.vmem %s0, %s239
        %s241 = smul.u32 2, %s20
        %s242 = smul.u32 2, %s20
        %v244 = vlaneseq
        %v245 = vand.u32 %v244, 127
        %vm246 = vcmp.eq.s32.totalorder %v245, 3
        %v247 = vsel %vm246, 1.0, 0.0
        %v248 = vpack.c.bf16 %v247, %v247
        %249 = vst [vmem:[#allocation2] sm:$0xff] %v248
        %v250 = vld [vmem:[%s240] sm:$0xff]
        %v251 = vld [vmem:[%s240 + $0x8] sm:$0xff]
        %v252 = vpack.c.bf16 %v251, %v250
        %vm253 = vcmask 23552
        %254 = vst.msk [vmem:[#allocation2] sm:$0xff] %vm253, %v252
        %v255 = vld [vmem:[#allocation2] sm:$0xff]
        %v256 = vld [vmem:[#allocation3] sm:$0xf]
        %v257 = vld [vmem:[#allocation3 + $0x4] sm:$0xf]
        %v258 = vld [vmem:[#allocation3 + $0x8] sm:$0xf]
        %v259 = vld [vmem:[#allocation3 + $0xc] sm:$0xf]
        %v260 = vld [vmem:[#allocation3 + $0x10] sm:$0xf]
        %v261 = vld [vmem:[#allocation3 + $0x14] sm:$0xf]
        %v262 = vld [vmem:[#allocation3 + $0x18] sm:$0xf]
        %v263 = vld [vmem:[#allocation3 + $0x1c] sm:$0xf]
        %v264 = vld [vmem:[#allocation3 + $0x20] sm:$0xf]
        %v265 = vld [vmem:[#allocation3 + $0x24] sm:$0xf]
        %v266 = vld [vmem:[#allocation3 + $0x28] sm:$0xf]
        %v267 = vld [vmem:[#allocation3 + $0x2c] sm:$0xf]
        %v268 = vld [vmem:[#allocation3 + $0x30] sm:$0xf]
        %v269 = vld [vmem:[#allocation3 + $0x34] sm:$0xf]
        %v270 = vld [vmem:[#allocation3 + $0x38] sm:$0xf]
        %v271 = vld [vmem:[#allocation3 + $0x3c] sm:$0xf]
        %v288 = vunpack.c.l.b16 %v256
        %v289 = vunpack.c.l.b16 %v257
        %v290 = vunpack.c.l.b16 %v258
        %v291 = vunpack.c.l.b16 %v259
        %v292 = vunpack.c.l.b16 %v260
        %v293 = vunpack.c.l.b16 %v261
        %v294 = vunpack.c.l.b16 %v262
        %v295 = vunpack.c.l.b16 %v263
        %v296 = vunpack.c.l.b16 %v264
        %v297 = vunpack.c.l.b16 %v265
        %v298 = vunpack.c.l.b16 %v266
        %v299 = vunpack.c.l.b16 %v267
        %v300 = vunpack.c.l.b16 %v268
        %v301 = vunpack.c.l.b16 %v269
        %v302 = vunpack.c.l.b16 %v270
        %v303 = vunpack.c.l.b16 %v271
        %v304 = vpack.c.b16 %v289, %v288
        %v305 = vpack.c.b16 %v291, %v290
        %v306 = vpack.c.b16 %v293, %v292
        %v307 = vpack.c.b16 %v295, %v294
        %v308 = vpack.c.b16 %v297, %v296
        %v309 = vpack.c.b16 %v299, %v298
        %v310 = vpack.c.b16 %v301, %v300
        %v311 = vpack.c.b16 %v303, %v302
        %320 = vmatprep.subr.bf16.mxu0 0
        %321 = vmatpush1.bf16.msra.mxu0 %v304
        %322 = vmatprep.subr.bf16.mxu0 0
        %323 = vmatpush1.bf16.msra.mxu0 %v305
        %324 = vmatprep.subr.bf16.mxu0 0
        %325 = vmatpush1.bf16.msra.mxu0 %v306
        %326 = vmatprep.subr.bf16.mxu0 0
        %327 = vmatpush1.bf16.msra.mxu0 %v307
        %328 = vmatprep.subr.bf16.mxu0 0
        %329 = vmatpush1.bf16.msra.mxu0 %v308
        %330 = vmatprep.subr.bf16.mxu0 0
        %331 = vmatpush1.bf16.msra.mxu0 %v309
        %332 = vmatprep.subr.bf16.mxu0 0
        %333 = vmatpush1.bf16.msra.mxu0 %v310
        %334 = vmatprep.subr.bf16.mxu0 0
        %335 = vmatpush1.bf16.msra.mxu0 %v311
        %336 = vmatprep.subr.bf16.mxu0 0
        %337 = vmatpush1.bf16.msra.mxu0 0
        %338 = vmatprep.subr.bf16.mxu0 0
        %339 = vmatpush1.bf16.msra.mxu0 0
        %340 = vmatprep.subr.bf16.mxu0 0
        %341 = vmatpush1.bf16.msra.mxu0 0
        %342 = vmatprep.subr.bf16.mxu0 0
        %343 = vmatpush1.bf16.msra.mxu0 0
        %344 = vmatprep.subr.bf16.mxu0 0
        %345 = vmatpush1.bf16.msra.mxu0 0
        %346 = vmatprep.subr.bf16.mxu0 0
        %347 = vmatpush1.bf16.msra.mxu0 0
        %348 = vmatprep.subr.bf16.mxu0 0
        %349 = vmatpush1.bf16.msra.mxu0 0
        %350 = vmatprep.subr.bf16.mxu0 0
        %351 = vmatpush1.bf16.msra.mxu0 0
        %352 = vmatprep.mubr.bf16.mxu0 0
        %353 = vmatmul.mubr.bf16.gmra.mrb[0].mxu0 %v255
        %v354 = vpop.f32.mrb[0].mxu0
        %v355 = vadd.f32 0.0, %v354
        %v356 = vpop.f32.mrb[0].mxu0
        %v357 = vpop.f32.mrb[0].mxu0
        %v358 = vadd.f32 0.0, %v357
        %v359 = vpop.f32.mrb[0].mxu0
        %360 = vdwg.mxu0
        %v361 = vmax.f32 %v355, 0.0
        %v362 = vmax.f32 %v358, 0.0
        %v363 = vpack.c.bf16 %v362, %v361
        %v364 = vld [vmem:[#allocation6] sm:$0xf]
        %v365 = vld [vmem:[#allocation6 + $0x4] sm:$0xf]
        %v366 = vld [vmem:[#allocation6 + $0x8] sm:$0xf]
        %v367 = vld [vmem:[#allocation6 + $0xc] sm:$0xf]
        %v368 = vld [vmem:[#allocation6 + $0x10] sm:$0xf]
        %v369 = vld [vmem:[#allocation6 + $0x14] sm:$0xf]
        %v370 = vld [vmem:[#allocation6 + $0x18] sm:$0xf]
        %v371 = vld [vmem:[#allocation6 + $0x1c] sm:$0xf]
        %v372 = vld [vmem:[#allocation6 + $0x20] sm:$0xf]
        %v373 = vld [vmem:[#allocation6 + $0x24] sm:$0xf]
        %v374 = vld [vmem:[#allocation6 + $0x28] sm:$0xf]
        %v375 = vld [vmem:[#allocation6 + $0x2c] sm:$0xf]
        %v376 = vld [vmem:[#allocation6 + $0x30] sm:$0xf]
        %v377 = vld [vmem:[#allocation6 + $0x34] sm:$0xf]
        %v378 = vld [vmem:[#allocation6 + $0x38] sm:$0xf]
        %v379 = vld [vmem:[#allocation6 + $0x3c] sm:$0xf]
        %v396 = vunpack.c.l.b16 %v364
        %v397 = vunpack.c.l.b16 %v365
        %v398 = vunpack.c.l.b16 %v366
        %v399 = vunpack.c.l.b16 %v367
        %v400 = vunpack.c.l.b16 %v368
        %v401 = vunpack.c.l.b16 %v369
        %v402 = vunpack.c.l.b16 %v370
        %v403 = vunpack.c.l.b16 %v371
        %v404 = vunpack.c.l.b16 %v372
        %v405 = vunpack.c.l.b16 %v373
        %v406 = vunpack.c.l.b16 %v374
        %v407 = vunpack.c.l.b16 %v375
        %v408 = vunpack.c.l.b16 %v376
        %v409 = vunpack.c.l.b16 %v377
        %v410 = vunpack.c.l.b16 %v378
        %v411 = vunpack.c.l.b16 %v379
        %v412 = vpack.c.b16 %v397, %v396
        %v413 = vpack.c.b16 %v399, %v398
        %v414 = vpack.c.b16 %v401, %v400
        %v415 = vpack.c.b16 %v403, %v402
        %v416 = vpack.c.b16 %v405, %v404
        %v417 = vpack.c.b16 %v407, %v406
        %v418 = vpack.c.b16 %v409, %v408
        %v419 = vpack.c.b16 %v411, %v410
        %428 = vmatprep.subr.bf16.mxu0 0
        %429 = vmatpush1.bf16.msra.mxu0 %v412
        %430 = vmatprep.subr.bf16.mxu0 0
        %431 = vmatpush1.bf16.msra.mxu0 %v413
        %432 = vmatprep.subr.bf16.mxu0 0
        %433 = vmatpush1.bf16.msra.mxu0 %v414
        %434 = vmatprep.subr.bf16.mxu0 0
        %435 = vmatpush1.bf16.msra.mxu0 %v415
        %436 = vmatprep.subr.bf16.mxu0 0
        %437 = vmatpush1.bf16.msra.mxu0 %v416
        %438 = vmatprep.subr.bf16.mxu0 0
        %439 = vmatpush1.bf16.msra.mxu0 %v417
        %440 = vmatprep.subr.bf16.mxu0 0
        %441 = vmatpush1.bf16.msra.mxu0 %v418
        %442 = vmatprep.subr.bf16.mxu0 0
        %443 = vmatpush1.bf16.msra.mxu0 %v419
        %444 = vmatprep.subr.bf16.mxu0 0
        %445 = vmatpush1.bf16.msra.mxu0 0
        %446 = vmatprep.subr.bf16.mxu0 0
        %447 = vmatpush1.bf16.msra.mxu0 0
        %448 = vmatprep.subr.bf16.mxu0 0
        %449 = vmatpush1.bf16.msra.mxu0 0
        %450 = vmatprep.subr.bf16.mxu0 0
        %451 = vmatpush1.bf16.msra.mxu0 0
        %452 = vmatprep.subr.bf16.mxu0 0
        %453 = vmatpush1.bf16.msra.mxu0 0
        %454 = vmatprep.subr.bf16.mxu0 0
        %455 = vmatpush1.bf16.msra.mxu0 0
        %456 = vmatprep.subr.bf16.mxu0 0
        %457 = vmatpush1.bf16.msra.mxu0 0
        %458 = vmatprep.subr.bf16.mxu0 0
        %459 = vmatpush1.bf16.msra.mxu0 0
        %460 = vmatprep.mubr.bf16.mxu0 0
        %461 = vmatmul.mubr.bf16.gmra.mrb[0].mxu0 %v363
        %v462 = vpop.f32.mrb[0].mxu0
        %v463 = vadd.f32 0.0, %v462
        %v464 = vpop.f32.mrb[0].mxu0
        %v465 = vpop.f32.mrb[0].mxu0
        %v466 = vadd.f32 0.0, %v465
        %v467 = vpop.f32.mrb[0].mxu0
        %468 = vdwg.mxu0
        %v469 = vmax.f32 %v463, 0.0
        %v470 = vmax.f32 %v466, 0.0
        %v471 = vpack.c.bf16 %v470, %v469
        %v472 = vld [vmem:[#allocation8] sm:$0xf]
        %v473 = vld [vmem:[#allocation8 + $0x4] sm:$0xf]
        %v474 = vld [vmem:[#allocation8 + $0x8] sm:$0xf]
        %v475 = vld [vmem:[#allocation8 + $0xc] sm:$0xf]
        %v476 = vld [vmem:[#allocation8 + $0x10] sm:$0xf]
        %v477 = vld [vmem:[#allocation8 + $0x14] sm:$0xf]
        %v478 = vld [vmem:[#allocation8 + $0x18] sm:$0xf]
        %v479 = vld [vmem:[#allocation8 + $0x1c] sm:$0xf]
        %v480 = vld [vmem:[#allocation8 + $0x20] sm:$0xf]
        %v481 = vld [vmem:[#allocation8 + $0x24] sm:$0xf]
        %v482 = vld [vmem:[#allocation8 + $0x28] sm:$0xf]
        %v483 = vld [vmem:[#allocation8 + $0x2c] sm:$0xf]
        %v484 = vld [vmem:[#allocation8 + $0x30] sm:$0xf]
        %v485 = vld [vmem:[#allocation8 + $0x34] sm:$0xf]
        %v486 = vld [vmem:[#allocation8 + $0x38] sm:$0xf]
        %v487 = vld [vmem:[#allocation8 + $0x3c] sm:$0xf]
        %v504 = vunpack.c.l.b16 %v472
        %v505 = vunpack.c.l.b16 %v473
        %v506 = vunpack.c.l.b16 %v474
        %v507 = vunpack.c.l.b16 %v475
        %v508 = vunpack.c.l.b16 %v476
        %v509 = vunpack.c.l.b16 %v477
        %v510 = vunpack.c.l.b16 %v478
        %v511 = vunpack.c.l.b16 %v479
        %v512 = vunpack.c.l.b16 %v480
        %v513 = vunpack.c.l.b16 %v481
        %v514 = vunpack.c.l.b16 %v482
        %v515 = vunpack.c.l.b16 %v483
        %v516 = vunpack.c.l.b16 %v484
        %v517 = vunpack.c.l.b16 %v485
        %v518 = vunpack.c.l.b16 %v486
        %v519 = vunpack.c.l.b16 %v487
        %v520 = vpack.c.b16 %v505, %v504
        %v521 = vpack.c.b16 %v507, %v506
        %v522 = vpack.c.b16 %v509, %v508
        %v523 = vpack.c.b16 %v511, %v510
        %v524 = vpack.c.b16 %v513, %v512
        %v525 = vpack.c.b16 %v515, %v514
        %v526 = vpack.c.b16 %v517, %v516
        %v527 = vpack.c.b16 %v519, %v518
        %536 = vmatprep.subr.bf16.mxu0 0
        %537 = vmatpush1.bf16.msra.mxu0 %v520
        %538 = vmatprep.subr.bf16.mxu0 0
        %539 = vmatpush1.bf16.msra.mxu0 %v521
        %540 = vmatprep.subr.bf16.mxu0 0
        %541 = vmatpush1.bf16.msra.mxu0 %v522
        %542 = vmatprep.subr.bf16.mxu0 0
        %543 = vmatpush1.bf16.msra.mxu0 %v523
        %544 = vmatprep.subr.bf16.mxu0 0
        %545 = vmatpush1.bf16.msra.mxu0 %v524
        %546 = vmatprep.subr.bf16.mxu0 0
        %547 = vmatpush1.bf16.msra.mxu0 %v525
        %548 = vmatprep.subr.bf16.mxu0 0
        %549 = vmatpush1.bf16.msra.mxu0 %v526
        %550 = vmatprep.subr.bf16.mxu0 0
        %551 = vmatpush1.bf16.msra.mxu0 %v527
        %552 = vmatprep.subr.bf16.mxu0 0
        %553 = vmatpush1.bf16.msra.mxu0 0
        %554 = vmatprep.subr.bf16.mxu0 0
        %555 = vmatpush1.bf16.msra.mxu0 0
        %556 = vmatprep.subr.bf16.mxu0 0
        %557 = vmatpush1.bf16.msra.mxu0 0
        %558 = vmatprep.subr.bf16.mxu0 0
        %559 = vmatpush1.bf16.msra.mxu0 0
        %560 = vmatprep.subr.bf16.mxu0 0
        %561 = vmatpush1.bf16.msra.mxu0 0
        %562 = vmatprep.subr.bf16.mxu0 0
        %563 = vmatpush1.bf16.msra.mxu0 0
        %564 = vmatprep.subr.bf16.mxu0 0
        %565 = vmatpush1.bf16.msra.mxu0 0
        %566 = vmatprep.subr.bf16.mxu0 0
        %567 = vmatpush1.bf16.msra.mxu0 0
        %568 = vmatprep.mubr.bf16.mxu0 0
        %569 = vmatmul.mubr.bf16.gmra.mrb[0].mxu0 %v471
        %v570 = vpop.f32.mrb[0].mxu0
        %v571 = vadd.f32 0.0, %v570
        %v572 = vpop.f32.mrb[0].mxu0
        %v573 = vpop.f32.mrb[0].mxu0
        %v574 = vadd.f32 0.0, %v573
        %v575 = vpop.f32.mrb[0].mxu0
        %576 = vdwg.mxu0
        %v577 = vpack.c.bf16 %v574, %v571
        %v579 = vunpack.c.l.b16 %v577
        %v580 = vunpack.c.h.b16 %v577
        %v581 = vpack.c.b16 %v579, %v579
        %v582 = vpack.c.b16 %v580, %v580
        %585 = vst [vmem:[%s235] sm:$0xf] %v581
        %586 = vst [vmem:[%s235 + $0x4] sm:$0xf] %v582
        %s587 = sand.u32 %s117, 1
        %s588 = scalar_lea.sflag [#allocation5], %s587
        %s589 = sand.u32 %s117, 1
        %s590 = smul.addr %s589, 8
        %s591 = scalar_lea.vmem [#allocation9], %s590
        // Predicated region
        $region49: #{tpu_custom_call.1} parent=35 // pred_check
          %p592 = pneg %p127
        $region50: #{tpu_custom_call.1} parent=35 // pred_check_branch
          %594 = sbr.rel (%p592) target = $region52
        $region51: #{tpu_custom_call.1} parent=35 // pred_region
          %s595 = smul.u32 2, %s20
          %s597 = ssub.s32 128, 128
          %598 = vsyncadd %s588, %s597
          %s599 = smul.addr %s595, 64
          %s600 = scalar_lea.hbm %s4, %s599
          %s601 = sshll.u32 %s591, 4
          %s602 = int_to_ptr.vmem [resolvable:$true] %s601
          %607 = dma.vmem_to_hbm [thread:$0]  %s602, 128, %s600, %s588, 64, 64, 4
        $region52: #{tpu_custom_call.1} parent=35 // pred_fallthru
          _
      $region36: #{tpu_custom_call.1} parent=5 // pred_fallthru
        _
      %p608 = scmp.le.s32.totalorder 2, %s15
      // Predicated region
      $region53: #{tpu_custom_call.1} parent=5 // pred_check
        %p609 = pneg %p608
      $region54: #{tpu_custom_call.1} parent=5 // pred_check_branch
        %611 = sbr.rel (%p609) target = $region56
      $region55: #{tpu_custom_call.1} parent=5 // pred_region
        %s612 = ssub.s32 %s15, 2
        // Predicated region
        $region57: #{tpu_custom_call.1} parent=55 // pred_check
          %p613 = pneg %p133
        $region58: #{tpu_custom_call.1} parent=55 // pred_check_branch
          %615 = sbr.rel (%p613) target = $region60
        $region59: #{tpu_custom_call.1} parent=55 // pred_region
          %s616 = sand.u32 %s118, 1
          %s617 = scalar_lea.sflag [#allocation5], %s616
          %s618 = sand.u32 %s118, 1
          %s619 = smul.addr %s618, 8
          %s620 = scalar_lea.vmem [#allocation9], %s619
          %621 = dma.done %s617, 128
        $region60: #{tpu_custom_call.1} parent=55 // pred_fallthru
          _
      $region56: #{tpu_custom_call.1} parent=5 // pred_fallthru
        _
    $region6: #{tpu_custom_call.1} parent=1 // loop_footer
      %s19 = sadd.s32 1, %s15
    $region7: #{tpu_custom_call.1} parent=1 // loop_footer_branch
      %14 = sbr.rel target = $region3
    $region8: #{tpu_custom_call.1} parent=1 // loop_exit
      _
    %622 = vsyncpa [#allocation4], 1
    %s623 = scalar_lea.sflag [#allocation4], 1
    %624 = vsyncpa %s623, 1
    %625 = vsyncpa [#allocation7], 1
    %626 = vsyncpa [#allocation5], 1
    %s627 = scalar_lea.sflag [#allocation5], 1
    %628 = vsyncpa %s627, 1

</llo_original>
